<compile_context>
chip_gen: v6e
topology: v6e:2x2x1
jax: 0.10.0
libtpu: 0.0.40
codegen_flags: <defaults>
</compile_context>

<pallas_src>
import functools

import jax
import jax.numpy as jnp
from jax.experimental import pallas as pl
from jax.experimental.pallas import tpu as pltpu


def mlp_kernel(x_ref, w1_ref, b1_ref, w2_ref, b2_ref, w3_ref, b3_ref, o_ref):
    # Fused: Linear -> LeakyReLU(0.2) -> Linear -> LeakyReLU(0.2) -> Linear.
    # Matmuls 1 & 2 run on the MXU in bf16 with f32 accumulation; the tiny
    # final layer stays f32 (256 x 128 dot) for accuracy.
    x = x_ref[...].astype(jnp.bfloat16)                              # in-VMEM cast
    h = jnp.dot(x, w1_ref[...], preferred_element_type=jnp.float32) + b1_ref[...]
    h = jnp.maximum(h, 0.2 * h)                                      # LeakyReLU, 2 VPU ops
    h = jnp.dot(h.astype(jnp.bfloat16), w2_ref[...],
                preferred_element_type=jnp.float32) + b2_ref[...]
    h = jnp.maximum(h, 0.2 * h)
    # Final 256 -> 1 layer as a lane-dense (256 -> 128) MXU dot; real weights
    # live in column 0, the rest are zeros.  Output block is (bm, 128).
    o_ref[...] = jnp.dot(h, w3_ref[...],
                         preferred_element_type=jnp.float32) + b3_ref[...]


def _choose_bm(b_eff: int, block_m: int) -> int:
    """Pick the batch tile: big serial tiles, but >= 2 balanced steps for v7x."""
    if b_eff <= 256:
        return b_eff
    n_steps = max(2, -(-b_eff // block_m))          # ceil-div, at least 2 steps
    bm = -(-b_eff // n_steps)                       # roughly-equal split
    bm = ((bm + 127) // 128) * 128                  # 128-row (MXU) alignment
    return min(bm, block_m, b_eff)


def prepare_params(params):
    """One-time weight prep (run OUTSIDE the jitted forward).

    Casts W1/W2 to bf16, reshapes biases to row vectors, and embeds the
    (256, 1) final weight / scalar bias into lane-dense (256, 128) / (1, 128)
    zero-padded arrays (column 0 holds the real values).
    """
    w1, b1, w2, b2, w3, b3 = params
    h2 = w2.shape[1]
    w1 = jnp.asarray(w1, jnp.bfloat16)
    w2 = jnp.asarray(w2, jnp.bfloat16)
    b1 = jnp.asarray(b1, jnp.float32).reshape(1, -1)
    b2 = jnp.asarray(b2, jnp.float32).reshape(1, -1)
    w3_pad = jnp.zeros((h2, 128), jnp.float32).at[:, 0:1].set(
        jnp.asarray(w3, jnp.float32).reshape(h2, 1))
    b3_pad = jnp.zeros((1, 128), jnp.float32).at[0, 0].set(
        jnp.asarray(b3, jnp.float32).reshape(()))
    return (w1, b1, w2, b2, w3_pad, b3_pad)


@functools.partial(jax.jit, static_argnames=("block_m",))
def gan_discriminator_forward(x_nchw, prepared, block_m=1024):
    """x_nchw: [B, C, H, W] with C*H*W == image_size**2 (C=1 for this GAN)."""
    w1, b1, w2, b2, w3_pad, b3_pad = prepared
    d = w1.shape[0]           # image_size ** 2
    h1 = w1.shape[1]          # 512
    h2 = w2.shape[1]          # 256

    # Flatten exactly like torch's x.view(-1, image_size**2).  No dtype cast
    # here: the kernel reads f32 and casts to bf16 in VMEM.
    x = x_nchw.reshape(-1, d)
    b_eff = x.shape[0]

    bm = _choose_bm(b_eff, block_m)
    grid = (pl.cdiv(b_eff, bm),)

    out = pl.pallas_call(
        mlp_kernel,
        out_shape=jax.ShapeDtypeStruct((b_eff, 128), jnp.float32),
        grid_spec=pltpu.PrefetchScalarGridSpec(
            num_scalar_prefetch=0,
            grid=grid,
            in_specs=[
                pl.BlockSpec((bm, d), lambda i: (i, 0)),     # x tile (streamed, f32)
                pl.BlockSpec((d, h1), lambda i: (0, 0)),     # W1 bf16 (VMEM-resident)
                pl.BlockSpec((1, h1), lambda i: (0, 0)),     # b1
                pl.BlockSpec((h1, h2), lambda i: (0, 0)),    # W2 bf16 (VMEM-resident)
                pl.BlockSpec((1, h2), lambda i: (0, 0)),     # b2
                pl.BlockSpec((h2, 128), lambda i: (0, 0)),   # W3 (lane-dense, f32)
                pl.BlockSpec((1, 128), lambda i: (0, 0)),    # b3 (folded into padded row)
            ],
            out_specs=pl.BlockSpec((bm, 128), lambda i: (i, 0)),
        ),
        # Batch axis is embarrassingly parallel -> v7x shards grid steps across
        # its 2 TensorCores; v5e/v6e run them as a cheap serial loop.
        compiler_params=pltpu.CompilerParams(
            dimension_semantics=("parallel",),
        ),
    )(x, w1, b1, w2, b2, w3_pad, b3_pad)

    # Only column 0 holds the real 256->1 output.
    return out[:, 0:1]


def init_params(image_size: int, key):
    """Deterministic synthetic init matching nn.Linear shapes (stored (in, out))."""
    d = image_size ** 2
    k1, k2, k3, k4, k5, k6 = jax.random.split(key, 6)

    def uniform(k, shape, fan_in):
        bound = 1.0 / jnp.sqrt(fan_in)
        return jax.random.uniform(k, shape, jnp.float32, -bound, bound)

    w1 = uniform(k1, (d, 512), d)
    b1 = uniform(k2, (1, 512), d)
    w2 = uniform(k3, (512, 256), 512)
    b2 = uniform(k4, (1, 256), 512)
    w3 = uniform(k5, (256, 1), 256)
    b3 = uniform(k6, (1, 1), 256)
    return (w1, b1, w2, b2, w3, b3)


def _reference_forward(x_nchw, params):
    # Pure-JAX reference with the same bf16 operand casts / f32 accumulation.
    w1, b1, w2, b2, w3, b3 = params
    d = w1.shape[0]
    x = x_nchw.reshape(-1, d)
    h = jnp.dot(x.astype(jnp.bfloat16), w1.astype(jnp.bfloat16),
                preferred_element_type=jnp.float32) + b1.reshape(1, -1)
    h = jnp.maximum(h, 0.2 * h)
    h = jnp.dot(h.astype(jnp.bfloat16), w2.astype(jnp.bfloat16),
                preferred_element_type=jnp.float32) + b2.reshape(1, -1)
    h = jnp.maximum(h, 0.2 * h)
    return jnp.dot(h, w3.astype(jnp.float32),
                   preferred_element_type=jnp.float32) + b3.reshape(1, 1)


if __name__ == "__main__":
    image_size = 16           # features = 16**2 = 256
    key = jax.random.PRNGKey(0)
    k_x, k_x2, k_p = jax.random.split(key, 3)
    params = init_params(image_size, k_p)
    # One-time weight prep (bf16 casts, lane-dense w3) outside the jitted forward.
    prepared = jax.block_until_ready(prepare_params(params))

    # Small case (matches the module's typical single-channel image input).
    batch = 2
    x = jax.random.normal(k_x, (batch, 1, image_size, image_size), jnp.float32)
    y = jax.block_until_ready(gan_discriminator_forward(x, prepared))
    y_ref = _reference_forward(x, params)
    assert y.shape == (batch, 1), y.shape
    assert jnp.allclose(y, y_ref, atol=1e-2, rtol=1e-2), (y, y_ref)

    # Larger batch: exercises the balanced multi-step grid (600 -> 384 + 216)
    # with a ragged last tile and no batch padding in HBM.
    batch2 = 600
    x2 = jax.random.normal(k_x2, (batch2, 1, image_size, image_size), jnp.float32)
    y2 = jax.block_until_ready(gan_discriminator_forward(x2, prepared))
    y2_ref = _reference_forward(x2, params)
    assert y2.shape == (batch2, 1), y2.shape
    assert jnp.allclose(y2, y2_ref, atol=1e-2, rtol=1e-2)

    print("KERNEL_OK")
</pallas_src>

<mosaic_0001>
module attributes {stable_mosaic.version = 11 : i64} {
  func.func @mlp_kernel(%arg0: i32, %arg1: memref<2x256xf32, #tpu.memory_space<vmem>>, %arg2: memref<256x512xbf16, #tpu.memory_space<vmem>>, %arg3: memref<1x512xf32, #tpu.memory_space<vmem>>, %arg4: memref<512x256xbf16, #tpu.memory_space<vmem>>, %arg5: memref<1x256xf32, #tpu.memory_space<vmem>>, %arg6: memref<256x128xf32, #tpu.memory_space<vmem>>, %arg7: memref<1x128xf32, #tpu.memory_space<vmem>>, %arg8: memref<2x128xf32, #tpu.memory_space<vmem>>) attributes {dimension_semantics = [#tpu.dimension_semantics<parallel>], iteration_bounds = array<i64: 1>, scalar_prefetch = 0 : i64, scratch_operands = 0 : i64, tpu.core_type = #tpu.core_type<tc>, window_params = [{transform_indices = @transform_0, window_bounds = array<i64: 2, 256>}, {pipeline_mode = #tpu.pipeline_mode<synchronous>, transform_indices = @transform_1, window_bounds = array<i64: 256, 512>}, {pipeline_mode = #tpu.pipeline_mode<synchronous>, transform_indices = @transform_2, window_bounds = array<i64: 1, 512>}, {pipeline_mode = #tpu.pipeline_mode<synchronous>, transform_indices = @transform_3, window_bounds = array<i64: 512, 256>}, {pipeline_mode = #tpu.pipeline_mode<synchronous>, transform_indices = @transform_4, window_bounds = array<i64: 1, 256>}, {pipeline_mode = #tpu.pipeline_mode<synchronous>, transform_indices = @transform_5, window_bounds = array<i64: 256, 128>}, {pipeline_mode = #tpu.pipeline_mode<synchronous>, transform_indices = @transform_6, window_bounds = array<i64: 1, 128>}, {transform_indices = @transform_7, window_bounds = array<i64: 2, 128>}]} {
    %c0 = arith.constant 0 : index
    %c0_0 = arith.constant 0 : index
    %0 = vector.load %arg1[%c0, %c0_0] : memref<2x256xf32, #tpu.memory_space<vmem>>, vector<2x256xf32>
    %1 = arith.truncf %0 : vector<2x256xf32> to vector<2x256xbf16>
    %c0_1 = arith.constant 0 : index
    %c0_2 = arith.constant 0 : index
    %2 = vector.load %arg2[%c0_1, %c0_2] : memref<256x512xbf16, #tpu.memory_space<vmem>>, vector<256x512xbf16>
    %cst = arith.constant dense<0.000000e+00> : vector<2x512xf32>
    %3 = tpu.matmul %1, %2, %cst {dimension_numbers = #tpu.dot_dimension_numbers<[1], [0], [0], [1], [0, 0, 1, 1], [], []>} : vector<2x256xbf16>, vector<256x512xbf16>, vector<2x512xf32> -> vector<2x512xf32>
    %c0_3 = arith.constant 0 : index
    %c0_4 = arith.constant 0 : index
    %4 = vector.load %arg3[%c0_3, %c0_4] : memref<1x512xf32, #tpu.memory_space<vmem>>, vector<1x512xf32>
    %5 = vector.broadcast %4 : vector<1x512xf32> to vector<2x512xf32>
    %6 = arith.addf %3, %5 : vector<2x512xf32>
    %cst_5 = arith.constant 2.000000e-01 : f32
    %7 = vector.broadcast %cst_5 : f32 to vector<2x512xf32>
    %8 = arith.mulf %7, %6 : vector<2x512xf32>
    %9 = arith.maximumf %6, %8 : vector<2x512xf32>
    %10 = arith.truncf %9 : vector<2x512xf32> to vector<2x512xbf16>
    %c0_6 = arith.constant 0 : index
    %c0_7 = arith.constant 0 : index
    %11 = vector.load %arg4[%c0_6, %c0_7] : memref<512x256xbf16, #tpu.memory_space<vmem>>, vector<512x256xbf16>
    %cst_8 = arith.constant dense<0.000000e+00> : vector<2x256xf32>
    %12 = tpu.matmul %10, %11, %cst_8 {dimension_numbers = #tpu.dot_dimension_numbers<[1], [0], [0], [1], [0, 0, 1, 1], [], []>} : vector<2x512xbf16>, vector<512x256xbf16>, vector<2x256xf32> -> vector<2x256xf32>
    %c0_9 = arith.constant 0 : index
    %c0_10 = arith.constant 0 : index
    %13 = vector.load %arg5[%c0_9, %c0_10] : memref<1x256xf32, #tpu.memory_space<vmem>>, vector<1x256xf32>
    %14 = vector.broadcast %13 : vector<1x256xf32> to vector<2x256xf32>
    %15 = arith.addf %12, %14 : vector<2x256xf32>
    %cst_11 = arith.constant 2.000000e-01 : f32
    %16 = vector.broadcast %cst_11 : f32 to vector<2x256xf32>
    %17 = arith.mulf %16, %15 : vector<2x256xf32>
    %18 = arith.maximumf %15, %17 : vector<2x256xf32>
    %c0_12 = arith.constant 0 : index
    %c0_13 = arith.constant 0 : index
    %19 = vector.load %arg6[%c0_12, %c0_13] : memref<256x128xf32, #tpu.memory_space<vmem>>, vector<256x128xf32>
    %cst_14 = arith.constant dense<0.000000e+00> : vector<2x128xf32>
    %20 = tpu.matmul %18, %19, %cst_14 {dimension_numbers = #tpu.dot_dimension_numbers<[1], [0], [0], [1], [0, 0, 1, 1], [], []>} : vector<2x256xf32>, vector<256x128xf32>, vector<2x128xf32> -> vector<2x128xf32>
    %c0_15 = arith.constant 0 : index
    %c0_16 = arith.constant 0 : index
    %21 = vector.load %arg7[%c0_15, %c0_16] : memref<1x128xf32, #tpu.memory_space<vmem>>, vector<1x128xf32>
    %22 = vector.broadcast %21 : vector<1x128xf32> to vector<2x128xf32>
    %23 = arith.addf %20, %22 : vector<2x128xf32>
    %c0_17 = arith.constant 0 : index
    %c0_18 = arith.constant 0 : index
    %24 = vector.load %arg8[%c0_17, %c0_18] : memref<2x128xf32, #tpu.memory_space<vmem>>, vector<2x128xf32>
    tpu.vector_store %arg8[%c0_17, %c0_18], %23 {strides = array<i32>} : memref<2x128xf32, #tpu.memory_space<vmem>>, vector<2x128xf32>,
    return
  }
  func.func @transform_0(%arg0: i32) -> (i32, i32) {
    %c0_i32 = arith.constant 0 : i32
    %c0_i32_0 = arith.constant 0 : i32
    return %arg0, %c0_i32 : i32, i32
  }
  func.func @transform_1(%arg0: i32) -> (i32, i32) {
    %c0_i32 = arith.constant 0 : i32
    %c0_i32_0 = arith.constant 0 : i32
    %c0_i32_1 = arith.constant 0 : i32
    return %c0_i32, %c0_i32_0 : i32, i32
  }
  func.func @transform_2(%arg0: i32) -> (i32, i32) {
    %c0_i32 = arith.constant 0 : i32
    %c0_i32_0 = arith.constant 0 : i32
    %c0_i32_1 = arith.constant 0 : i32
    return %c0_i32, %c0_i32_0 : i32, i32
  }
  func.func @transform_3(%arg0: i32) -> (i32, i32) {
    %c0_i32 = arith.constant 0 : i32
    %c0_i32_0 = arith.constant 0 : i32
    %c0_i32_1 = arith.constant 0 : i32
    return %c0_i32, %c0_i32_0 : i32, i32
  }
  func.func @transform_4(%arg0: i32) -> (i32, i32) {
    %c0_i32 = arith.constant 0 : i32
    %c0_i32_0 = arith.constant 0 : i32
    %c0_i32_1 = arith.constant 0 : i32
    return %c0_i32, %c0_i32_0 : i32, i32
  }
  func.func @transform_5(%arg0: i32) -> (i32, i32) {
    %c0_i32 = arith.constant 0 : i32
    %c0_i32_0 = arith.constant 0 : i32
    %c0_i32_1 = arith.constant 0 : i32
    return %c0_i32, %c0_i32_0 : i32, i32
  }
  func.func @transform_6(%arg0: i32) -> (i32, i32) {
    %c0_i32 = arith.constant 0 : i32
    %c0_i32_0 = arith.constant 0 : i32
    %c0_i32_1 = arith.constant 0 : i32
    return %c0_i32, %c0_i32_0 : i32, i32
  }
  func.func @transform_7(%arg0: i32) -> (i32, i32) {
    %c0_i32 = arith.constant 0 : i32
    %c0_i32_0 = arith.constant 0 : i32
    return %arg0, %c0_i32 : i32, i32
  }
}

</mosaic_0001>

<llo_original>
// kernel: gan_discriminator_forward.1
$region0: #{gan_discriminator_forward.1}
  #allocation0 [shape = 'u32[]', space=smem, size = 0x4, offset = 0x4, fixed_abs, tag = 'smem constant byte address 0x4 - core index']
  #allocation1 [shape = 'u32[144,128]{1,0:T(1,128)}', space=vmem, size = 0x12000, scoped, tag = 'internal scratch']
  %s0 = inlined_call_operand.vmem [shape: f32[2,256], index: 0, kind: input, shape index: {}]
  %s1 = inlined_call_operand.hbm [shape: bf16[256,512], index: 1, kind: input, shape index: {}]
  %s2 = inlined_call_operand.vmem [shape: f32[1,512], index: 2, kind: input, shape index: {}]
  %s3 = inlined_call_operand.hbm [shape: bf16[512,256], index: 3, kind: input, shape index: {}]
  %s4 = inlined_call_operand.vmem [shape: f32[1,256], index: 4, kind: input, shape index: {}]
  %s5 = inlined_call_operand.hbm [shape: f32[256,128], index: 5, kind: input, shape index: {}]
  %s6 = inlined_call_operand.vmem [shape: f32[1,128], index: 6, kind: input, shape index: {}]
  %s7 = inlined_call_operand.vmem [shape: f32[2,128], index: 7, kind: output, shape index: {}]
  %s8 = sld [smem:[#allocation0]]
  $region50: #{gan_discriminator_forward.1} parent=0
    _
  %s10 = ssub.s32 1, %s8
  %s11 = scalar_select 0, %s10, %s8
  $region1: #{gan_discriminator_forward.1} parent=0
    #allocation2 [shape = 'u8[262144]{0}', space=vmem, size = 0x40000, scoped, tag = 'input window, operand 1, single buffered']
    #allocation3 [shape = 's32[1]{0}', space=sflag, size = 0x4, scoped, tag = 'scoped memory for gan_discriminator_forward.1']
    #allocation4 [shape = 'u8[262144]{0}', space=vmem, size = 0x40000, scoped, tag = 'input window, operand 3, single buffered']
    #allocation5 [shape = 's32[1]{0}', space=sflag, size = 0x4, scoped, tag = 'scoped memory for gan_discriminator_forward.1']
    #allocation6 [shape = 'u8[131072]{0}', space=vmem, size = 0x20000, scoped, tag = 'input window, operand 5, single buffered']
    %12 = vsyncpa [#allocation3], 0
    %13 = vsyncpa [#allocation5], 0
    // Predicated region
    $region2: #{gan_discriminator_forward.1} parent=1 // pred_check
      _
    $region3: #{gan_discriminator_forward.1} parent=1 // pred_check_branch
      %15 = sbr.rel (0) target = $region5
    $region4: #{gan_discriminator_forward.1} parent=1 // pred_region
      _
    $region5: #{gan_discriminator_forward.1} parent=1 // pred_fallthru
      _
    // Predicated region
    $region6: #{gan_discriminator_forward.1} parent=1 // pred_check
      _
    $region7: #{gan_discriminator_forward.1} parent=1 // pred_check_branch
      %17 = sbr.rel (0) target = $region9
    $region8: #{gan_discriminator_forward.1} parent=1 // pred_region
      %s19 = ssub.s32 8192, 8192
      %20 = vsyncadd [#allocation3], %s19
      %s21 = sshll.u32 [#allocation2], 4
      %s22 = int_to_ptr.vmem [resolvable:$true] %s21
      %27 = dma.hbm_to_vmem [thread:$0]  %s1, 8192, %s22, [#allocation3], 256, 256, 16
    $region9: #{gan_discriminator_forward.1} parent=1 // pred_fallthru
      _
    // Predicated region
    $region10: #{gan_discriminator_forward.1} parent=1 // pred_check
      _
    $region11: #{gan_discriminator_forward.1} parent=1 // pred_check_branch
      %29 = sbr.rel (0) target = $region13
    $region12: #{gan_discriminator_forward.1} parent=1 // pred_region
      _
    $region13: #{gan_discriminator_forward.1} parent=1 // pred_fallthru
      _
    // Predicated region
    $region14: #{gan_discriminator_forward.1} parent=1 // pred_check
      _
    $region15: #{gan_discriminator_forward.1} parent=1 // pred_check_branch
      %31 = sbr.rel (0) target = $region17
    $region16: #{gan_discriminator_forward.1} parent=1 // pred_region
      %s33 = ssub.s32 8192, 8192
      %34 = vsyncadd [#allocation5], %s33
      %s35 = sshll.u32 [#allocation4], 4
      %s36 = int_to_ptr.vmem [resolvable:$true] %s35
      %41 = dma.hbm_to_vmem [thread:$0]  %s3, 8192, %s36, [#allocation5], 128, 128, 8
    $region17: #{gan_discriminator_forward.1} parent=1 // pred_fallthru
      _
    // Predicated region
    $region18: #{gan_discriminator_forward.1} parent=1 // pred_check
      _
    $region19: #{gan_discriminator_forward.1} parent=1 // pred_check_branch
      %43 = sbr.rel (0) target = $region21
    $region20: #{gan_discriminator_forward.1} parent=1 // pred_region
      _
    $region21: #{gan_discriminator_forward.1} parent=1 // pred_fallthru
      _
    // Predicated region
    $region22: #{gan_discriminator_forward.1} parent=1 // pred_check
      _
    $region23: #{gan_discriminator_forward.1} parent=1 // pred_check_branch
      %45 = sbr.rel (0) target = $region25
    $region24: #{gan_discriminator_forward.1} parent=1 // pred_region
      %s47 = ssub.s32 4096, 4096
      %48 = vsyncadd [#allocation5], %s47
      %s49 = sshll.u32 [#allocation6], 4
      %s50 = int_to_ptr.vmem [resolvable:$true] %s49
      %55 = dma.hbm_to_vmem [thread:$0]  %s5, 4096, %s50, [#allocation5], 128, 128, 8
    $region25: #{gan_discriminator_forward.1} parent=1 // pred_fallthru
      _
    // Predicated region
    $region26: #{gan_discriminator_forward.1} parent=1 // pred_check
      _
    $region27: #{gan_discriminator_forward.1} parent=1 // pred_check_branch
      %57 = sbr.rel (0) target = $region29
    $region28: #{gan_discriminator_forward.1} parent=1 // pred_region
      _
    $region29: #{gan_discriminator_forward.1} parent=1 // pred_fallthru
      _
    // Predicated region
    $region30: #{gan_discriminator_forward.1} parent=1 // pred_check
      _
    $region31: #{gan_discriminator_forward.1} parent=1 // pred_check_branch
      %59 = sbr.rel (0) target = $region33
    $region32: #{gan_discriminator_forward.1} parent=1 // pred_region
      %60 = dma.done [#allocation3], 8192
    $region33: #{gan_discriminator_forward.1} parent=1 // pred_fallthru
      _
    // Predicated region
    $region34: #{gan_discriminator_forward.1} parent=1 // pred_check
      _
    $region35: #{gan_discriminator_forward.1} parent=1 // pred_check_branch
      %62 = sbr.rel (0) target = $region37
    $region36: #{gan_discriminator_forward.1} parent=1 // pred_region
      %63 = dma.done [#allocation5], 8192
    $region37: #{gan_discriminator_forward.1} parent=1 // pred_fallthru
      _
    // Predicated region
    $region38: #{gan_discriminator_forward.1} parent=1 // pred_check
      _
    $region39: #{gan_discriminator_forward.1} parent=1 // pred_check_branch
      %65 = sbr.rel (0) target = $region41
    $region40: #{gan_discriminator_forward.1} parent=1 // pred_region
      %66 = dma.done [#allocation5], 4096
    $region41: #{gan_discriminator_forward.1} parent=1 // pred_fallthru
      _
    %v67 = vld [vmem:[%s0] sm:$0xf]
    %v70 = vunpack.c.l.s4 1983009808
    %v71 = vunpack.c.0.s8 %v70
    %v72 = vlaneseq
    %v73 = vshrl.u32 %v72, 7
    %v74 = vsub.s32 %v71, %v73
    %v75 = vrot.slane %v67, %v74
    %v76 = vcombine.high %v75, %v75
    %v79 = vpack.c.bf16 %v75, %v75
    %v80 = vpack.c.bf16 %v76, %v76
    %v81 = vld [vmem:[#allocation2] sm:$0xff]
    %v82 = vld [vmem:[#allocation2 + $0x8] sm:$0xff]
    %v83 = vld [vmem:[#allocation2 + $0x10] sm:$0xff]
    %v84 = vld [vmem:[#allocation2 + $0x18] sm:$0xff]
    %v85 = vld [vmem:[#allocation2 + $0x20] sm:$0xff]
    %v86 = vld [vmem:[#allocation2 + $0x28] sm:$0xff]
    %v87 = vld [vmem:[#allocation2 + $0x30] sm:$0xff]
    %v88 = vld [vmem:[#allocation2 + $0x38] sm:$0xff]
    %v89 = vld [vmem:[#allocation2 + $0x40] sm:$0xff]
    %v90 = vld [vmem:[#allocation2 + $0x48] sm:$0xff]
    %v91 = vld [vmem:[#allocation2 + $0x50] sm:$0xff]
    %v92 = vld [vmem:[#allocation2 + $0x58] sm:$0xff]
    %v93 = vld [vmem:[#allocation2 + $0x60] sm:$0xff]
    %v94 = vld [vmem:[#allocation2 + $0x68] sm:$0xff]
    %v95 = vld [vmem:[#allocation2 + $0x70] sm:$0xff]
    %v96 = vld [vmem:[#allocation2 + $0x78] sm:$0xff]
    %v97 = vld [vmem:[#allocation2 + $0x80] sm:$0xff]
    %v98 = vld [vmem:[#allocation2 + $0x88] sm:$0xff]
    %v99 = vld [vmem:[#allocation2 + $0x90] sm:$0xff]
    %v100 = vld [vmem:[#allocation2 + $0x98] sm:$0xff]
    %v101 = vld [vmem:[#allocation2 + $0xa0] sm:$0xff]
    %v102 = vld [vmem:[#allocation2 + $0xa8] sm:$0xff]
    %v103 = vld [vmem:[#allocation2 + $0xb0] sm:$0xff]
    %v104 = vld [vmem:[#allocation2 + $0xb8] sm:$0xff]
    %v105 = vld [vmem:[#allocation2 + $0xc0] sm:$0xff]
    %v106 = vld [vmem:[#allocation2 + $0xc8] sm:$0xff]
    %v107 = vld [vmem:[#allocation2 + $0xd0] sm:$0xff]
    %v108 = vld [vmem:[#allocation2 + $0xd8] sm:$0xff]
    %v109 = vld [vmem:[#allocation2 + $0xe0] sm:$0xff]
    %v110 = vld [vmem:[#allocation2 + $0xe8] sm:$0xff]
    %v111 = vld [vmem:[#allocation2 + $0xf0] sm:$0xff]
    %v112 = vld [vmem:[#allocation2 + $0xf8] sm:$0xff]
    %v113 = vld [vmem:[#allocation2 + $0x100] sm:$0xff]
    %v114 = vld [vmem:[#allocation2 + $0x108] sm:$0xff]
    %v115 = vld [vmem:[#allocation2 + $0x110] sm:$0xff]
    %v116 = vld [vmem:[#allocation2 + $0x118] sm:$0xff]
    %v117 = vld [vmem:[#allocation2 + $0x120] sm:$0xff]
    %v118 = vld [vmem:[#allocation2 + $0x128] sm:$0xff]
    %v119 = vld [vmem:[#allocation2 + $0x130] sm:$0xff]
    %v120 = vld [vmem:[#allocation2 + $0x138] sm:$0xff]
    %v121 = vld [vmem:[#allocation2 + $0x140] sm:$0xff]
    %v122 = vld [vmem:[#allocation2 + $0x148] sm:$0xff]
    %v123 = vld [vmem:[#allocation2 + $0x150] sm:$0xff]
    %v124 = vld [vmem:[#allocation2 + $0x158] sm:$0xff]
    %v125 = vld [vmem:[#allocation2 + $0x160] sm:$0xff]
    %v126 = vld [vmem:[#allocation2 + $0x168] sm:$0xff]
    %v127 = vld [vmem:[#allocation2 + $0x170] sm:$0xff]
    %v128 = vld [vmem:[#allocation2 + $0x178] sm:$0xff]
    %v129 = vld [vmem:[#allocation2 + $0x180] sm:$0xff]
    %v130 = vld [vmem:[#allocation2 + $0x188] sm:$0xff]
    %v131 = vld [vmem:[#allocation2 + $0x190] sm:$0xff]
    %v132 = vld [vmem:[#allocation2 + $0x198] sm:$0xff]
    %v133 = vld [vmem:[#allocation2 + $0x1a0] sm:$0xff]
    %v134 = vld [vmem:[#allocation2 + $0x1a8] sm:$0xff]
    %v135 = vld [vmem:[#allocation2 + $0x1b0] sm:$0xff]
    %v136 = vld [vmem:[#allocation2 + $0x1b8] sm:$0xff]
    %v137 = vld [vmem:[#allocation2 + $0x1c0] sm:$0xff]
    %v138 = vld [vmem:[#allocation2 + $0x1c8] sm:$0xff]
    %v139 = vld [vmem:[#allocation2 + $0x1d0] sm:$0xff]
    %v140 = vld [vmem:[#allocation2 + $0x1d8] sm:$0xff]
    %v141 = vld [vmem:[#allocation2 + $0x1e0] sm:$0xff]
    %v142 = vld [vmem:[#allocation2 + $0x1e8] sm:$0xff]
    %v143 = vld [vmem:[#allocation2 + $0x1f0] sm:$0xff]
    %v144 = vld [vmem:[#allocation2 + $0x1f8] sm:$0xff]
    %v145 = vld [vmem:[%s2] sm:$0xf]
    %v147 = vlaneseq
    %v148 = vshrl.u32 %v147, 7
    %v149 = vsub.s32 0, %v148
    %v150 = vrot.slane %v145, %v149
    %v151 = vlaneseq
    %v152 = vshrl.u32 %v151, 7
    %v153 = vsub.s32 1, %v152
    %v154 = vrot.slane %v145, %v153
    %v155 = vlaneseq
    %v156 = vshrl.u32 %v155, 7
    %v157 = vsub.s32 2, %v156
    %v158 = vrot.slane %v145, %v157
    %v159 = vlaneseq
    %v160 = vshrl.u32 %v159, 7
    %v161 = vsub.s32 3, %v160
    %v162 = vrot.slane %v145, %v161
    %v231 = vunpack.c.l.b16 %v81
    %v232 = vunpack.c.h.b16 %v81
    %v233 = vunpack.c.l.b16 %v82
    %v234 = vunpack.c.h.b16 %v82
    %v235 = vunpack.c.l.b16 %v83
    %v236 = vunpack.c.h.b16 %v83
    %v237 = vunpack.c.l.b16 %v84
    %v238 = vunpack.c.h.b16 %v84
    %v239 = vunpack.c.l.b16 %v85
    %v240 = vunpack.c.h.b16 %v85
    %v241 = vunpack.c.l.b16 %v86
    %v242 = vunpack.c.h.b16 %v86
    %v243 = vunpack.c.l.b16 %v87
    %v244 = vunpack.c.h.b16 %v87
    %v245 = vunpack.c.l.b16 %v88
    %v246 = vunpack.c.h.b16 %v88
    %v247 = vunpack.c.l.b16 %v89
    %v248 = vunpack.c.h.b16 %v89
    %v249 = vunpack.c.l.b16 %v90
    %v250 = vunpack.c.h.b16 %v90
    %v251 = vunpack.c.l.b16 %v91
    %v252 = vunpack.c.h.b16 %v91
    %v253 = vunpack.c.l.b16 %v92
    %v254 = vunpack.c.h.b16 %v92
    %v255 = vunpack.c.l.b16 %v93
    %v256 = vunpack.c.h.b16 %v93
    %v257 = vunpack.c.l.b16 %v94
    %v258 = vunpack.c.h.b16 %v94
    %v259 = vunpack.c.l.b16 %v95
    %v260 = vunpack.c.h.b16 %v95
    %v261 = vunpack.c.l.b16 %v96
    %v262 = vunpack.c.h.b16 %v96
    %v263 = vunpack.c.l.b16 %v97
    %v264 = vunpack.c.h.b16 %v97
    %v265 = vunpack.c.l.b16 %v98
    %v266 = vunpack.c.h.b16 %v98
    %v267 = vunpack.c.l.b16 %v99
    %v268 = vunpack.c.h.b16 %v99
    %v269 = vunpack.c.l.b16 %v100
    %v270 = vunpack.c.h.b16 %v100
    %v271 = vunpack.c.l.b16 %v101
    %v272 = vunpack.c.h.b16 %v101
    %v273 = vunpack.c.l.b16 %v102
    %v274 = vunpack.c.h.b16 %v102
    %v275 = vunpack.c.l.b16 %v103
    %v276 = vunpack.c.h.b16 %v103
    %v277 = vunpack.c.l.b16 %v104
    %v278 = vunpack.c.h.b16 %v104
    %v279 = vunpack.c.l.b16 %v105
    %v280 = vunpack.c.h.b16 %v105
    %v281 = vunpack.c.l.b16 %v106
    %v282 = vunpack.c.h.b16 %v106
    %v283 = vunpack.c.l.b16 %v107
    %v284 = vunpack.c.h.b16 %v107
    %v285 = vunpack.c.l.b16 %v108
    %v286 = vunpack.c.h.b16 %v108
    %v287 = vunpack.c.l.b16 %v109
    %v288 = vunpack.c.h.b16 %v109
    %v289 = vunpack.c.l.b16 %v110
    %v290 = vunpack.c.h.b16 %v110
    %v291 = vunpack.c.l.b16 %v111
    %v292 = vunpack.c.h.b16 %v111
    %v293 = vunpack.c.l.b16 %v112
    %v294 = vunpack.c.h.b16 %v112
    %v295 = vunpack.c.l.b16 %v113
    %v296 = vunpack.c.h.b16 %v113
    %v297 = vunpack.c.l.b16 %v114
    %v298 = vunpack.c.h.b16 %v114
    %v299 = vunpack.c.l.b16 %v115
    %v300 = vunpack.c.h.b16 %v115
    %v301 = vunpack.c.l.b16 %v116
    %v302 = vunpack.c.h.b16 %v116
    %v303 = vunpack.c.l.b16 %v117
    %v304 = vunpack.c.h.b16 %v117
    %v305 = vunpack.c.l.b16 %v118
    %v306 = vunpack.c.h.b16 %v118
    %v307 = vunpack.c.l.b16 %v119
    %v308 = vunpack.c.h.b16 %v119
    %v309 = vunpack.c.l.b16 %v120
    %v310 = vunpack.c.h.b16 %v120
    %v311 = vunpack.c.l.b16 %v121
    %v312 = vunpack.c.h.b16 %v121
    %v313 = vunpack.c.l.b16 %v122
    %v314 = vunpack.c.h.b16 %v122
    %v315 = vunpack.c.l.b16 %v123
    %v316 = vunpack.c.h.b16 %v123
    %v317 = vunpack.c.l.b16 %v124
    %v318 = vunpack.c.h.b16 %v124
    %v319 = vunpack.c.l.b16 %v125
    %v320 = vunpack.c.h.b16 %v125
    %v321 = vunpack.c.l.b16 %v126
    %v322 = vunpack.c.h.b16 %v126
    %v323 = vunpack.c.l.b16 %v127
    %v324 = vunpack.c.h.b16 %v127
    %v325 = vunpack.c.l.b16 %v128
    %v326 = vunpack.c.h.b16 %v128
    %v327 = vunpack.c.l.b16 %v129
    %v328 = vunpack.c.h.b16 %v129
    %v329 = vunpack.c.l.b16 %v130
    %v330 = vunpack.c.h.b16 %v130
    %v331 = vunpack.c.l.b16 %v131
    %v332 = vunpack.c.h.b16 %v131
    %v333 = vunpack.c.l.b16 %v132
    %v334 = vunpack.c.h.b16 %v132
    %v335 = vunpack.c.l.b16 %v133
    %v336 = vunpack.c.h.b16 %v133
    %v337 = vunpack.c.l.b16 %v134
    %v338 = vunpack.c.h.b16 %v134
    %v339 = vunpack.c.l.b16 %v135
    %v340 = vunpack.c.h.b16 %v135
    %v341 = vunpack.c.l.b16 %v136
    %v342 = vunpack.c.h.b16 %v136
    %v343 = vunpack.c.l.b16 %v137
    %v344 = vunpack.c.h.b16 %v137
    %v345 = vunpack.c.l.b16 %v138
    %v346 = vunpack.c.h.b16 %v138
    %v347 = vunpack.c.l.b16 %v139
    %v348 = vunpack.c.h.b16 %v139
    %v349 = vunpack.c.l.b16 %v140
    %v350 = vunpack.c.h.b16 %v140
    %v351 = vunpack.c.l.b16 %v141
    %v352 = vunpack.c.h.b16 %v141
    %v353 = vunpack.c.l.b16 %v142
    %v354 = vunpack.c.h.b16 %v142
    %v355 = vunpack.c.l.b16 %v143
    %v356 = vunpack.c.h.b16 %v143
    %v357 = vunpack.c.l.b16 %v144
    %v358 = vunpack.c.h.b16 %v144
    %v359 = vpack.c.b16 %v235, %v231
    %v360 = vpack.c.b16 %v236, %v232
    %v361 = vpack.c.b16 %v237, %v233
    %v362 = vpack.c.b16 %v238, %v234
    %v363 = vpack.c.b16 %v243, %v239
    %v364 = vpack.c.b16 %v244, %v240
    %v365 = vpack.c.b16 %v245, %v241
    %v366 = vpack.c.b16 %v246, %v242
    %v367 = vpack.c.b16 %v251, %v247
    %v368 = vpack.c.b16 %v252, %v248
    %v369 = vpack.c.b16 %v253, %v249
    %v370 = vpack.c.b16 %v254, %v250
    %v371 = vpack.c.b16 %v259, %v255
    %v372 = vpack.c.b16 %v260, %v256
    %v373 = vpack.c.b16 %v261, %v257
    %v374 = vpack.c.b16 %v262, %v258
    %v375 = vpack.c.b16 %v267, %v263
    %v376 = vpack.c.b16 %v268, %v264
    %v377 = vpack.c.b16 %v269, %v265
    %v378 = vpack.c.b16 %v270, %v266
    %v379 = vpack.c.b16 %v275, %v271
    %v380 = vpack.c.b16 %v276, %v272
    %v381 = vpack.c.b16 %v277, %v273
    %v382 = vpack.c.b16 %v278, %v274
    %v383 = vpack.c.b16 %v283, %v279
    %v384 = vpack.c.b16 %v284, %v280
    %v385 = vpack.c.b16 %v285, %v281
    %v386 = vpack.c.b16 %v286, %v282
    %v387 = vpack.c.b16 %v291, %v287
    %v388 = vpack.c.b16 %v292, %v288
    %v389 = vpack.c.b16 %v293, %v289
    %v390 = vpack.c.b16 %v294, %v290
    %v391 = vpack.c.b16 %v299, %v295
    %v392 = vpack.c.b16 %v300, %v296
    %v393 = vpack.c.b16 %v301, %v297
    %v394 = vpack.c.b16 %v302, %v298
    %v395 = vpack.c.b16 %v307, %v303
    %v396 = vpack.c.b16 %v308, %v304
    %v397 = vpack.c.b16 %v309, %v305
    %v398 = vpack.c.b16 %v310, %v306
    %v399 = vpack.c.b16 %v315, %v311
    %v400 = vpack.c.b16 %v316, %v312
    %v401 = vpack.c.b16 %v317, %v313
    %v402 = vpack.c.b16 %v318, %v314
    %v403 = vpack.c.b16 %v323, %v319
    %v404 = vpack.c.b16 %v324, %v320
    %v405 = vpack.c.b16 %v325, %v321
    %v406 = vpack.c.b16 %v326, %v322
    %v407 = vpack.c.b16 %v331, %v327
    %v408 = vpack.c.b16 %v332, %v328
    %v409 = vpack.c.b16 %v333, %v329
    %v410 = vpack.c.b16 %v334, %v330
    %v411 = vpack.c.b16 %v339, %v335
    %v412 = vpack.c.b16 %v340, %v336
    %v413 = vpack.c.b16 %v341, %v337
    %v414 = vpack.c.b16 %v342, %v338
    %v415 = vpack.c.b16 %v347, %v343
    %v416 = vpack.c.b16 %v348, %v344
    %v417 = vpack.c.b16 %v349, %v345
    %v418 = vpack.c.b16 %v350, %v346
    %v419 = vpack.c.b16 %v355, %v351
    %v420 = vpack.c.b16 %v356, %v352
    %v421 = vpack.c.b16 %v357, %v353
    %v422 = vpack.c.b16 %v358, %v354
    %487 = vmatprep.subr.bf16.mxu0 %v388
    %488 = vmatpush1.bf16.msra.mxu0 %v387
    %489 = vmatprep.subr.bf16.mxu0 %v384
    %490 = vmatpush1.bf16.msra.mxu0 %v383
    %491 = vmatprep.subr.bf16.mxu0 %v380
    %492 = vmatpush1.bf16.msra.mxu0 %v379
    %493 = vmatprep.subr.bf16.mxu0 %v376
    %494 = vmatpush1.bf16.msra.mxu0 %v375
    %495 = vmatprep.subr.bf16.mxu0 %v372
    %496 = vmatpush1.bf16.msra.mxu0 %v371
    %497 = vmatprep.subr.bf16.mxu0 %v368
    %498 = vmatpush1.bf16.msra.mxu0 %v367
    %499 = vmatprep.subr.bf16.mxu0 %v364
    %500 = vmatpush1.bf16.msra.mxu0 %v363
    %501 = vmatprep.subr.bf16.mxu0 %v360
    %502 = vmatpush1.bf16.msra.mxu0 %v359
    %503 = vmatprep.subr.bf16.mxu0 %v420
    %504 = vmatpush2.bf16.msra.mxu0 %v419
    %505 = vmatprep.subr.bf16.mxu0 %v416
    %506 = vmatpush2.bf16.msra.mxu0 %v415
    %507 = vmatprep.subr.bf16.mxu0 %v412
    %508 = vmatpush2.bf16.msra.mxu0 %v411
    %509 = vmatprep.subr.bf16.mxu0 %v408
    %510 = vmatpush2.bf16.msra.mxu0 %v407
    %511 = vmatprep.subr.bf16.mxu0 %v404
    %512 = vmatpush2.bf16.msra.mxu0 %v403
    %513 = vmatprep.subr.bf16.mxu0 %v400
    %514 = vmatpush2.bf16.msra.mxu0 %v399
    %515 = vmatprep.subr.bf16.mxu0 %v396
    %516 = vmatpush2.bf16.msra.mxu0 %v395
    %517 = vmatprep.subr.bf16.mxu0 %v392
    %518 = vmatpush2.bf16.msra.mxu0 %v391
    %519 = vmatprep.mubr.bf16.mxu0 %v80
    %520 = vmatmul.mubr.bf16.gmra.mxu0 %v79
    %v521 = vpop.f32.mrf.mxu0
    %v522 = vadd.f32 %v150, %v521
    %v523 = vpop.f32.mrf.mxu0
    %v524 = vadd.f32 %v154, %v523
    %v525 = vpop.f32.mrf.mxu0
    %v526 = vpop.f32.mrf.mxu0
    %527 = vdwg.mxu0
    %528 = vmatprep.subr.bf16.mxu0 %v390
    %529 = vmatpush1.bf16.msra.mxu0 %v389
    %530 = vmatprep.subr.bf16.mxu0 %v386
    %531 = vmatpush1.bf16.msra.mxu0 %v385
    %532 = vmatprep.subr.bf16.mxu0 %v382
    %533 = vmatpush1.bf16.msra.mxu0 %v381
    %534 = vmatprep.subr.bf16.mxu0 %v378
    %535 = vmatpush1.bf16.msra.mxu0 %v377
    %536 = vmatprep.subr.bf16.mxu0 %v374
    %537 = vmatpush1.bf16.msra.mxu0 %v373
    %538 = vmatprep.subr.bf16.mxu0 %v370
    %539 = vmatpush1.bf16.msra.mxu0 %v369
    %540 = vmatprep.subr.bf16.mxu0 %v366
    %541 = vmatpush1.bf16.msra.mxu0 %v365
    %542 = vmatprep.subr.bf16.mxu0 %v362
    %543 = vmatpush1.bf16.msra.mxu0 %v361
    %544 = vmatprep.subr.bf16.mxu0 %v422
    %545 = vmatpush2.bf16.msra.mxu0 %v421
    %546 = vmatprep.subr.bf16.mxu0 %v418
    %547 = vmatpush2.bf16.msra.mxu0 %v417
    %548 = vmatprep.subr.bf16.mxu0 %v414
    %549 = vmatpush2.bf16.msra.mxu0 %v413
    %550 = vmatprep.subr.bf16.mxu0 %v410
    %551 = vmatpush2.bf16.msra.mxu0 %v409
    %552 = vmatprep.subr.bf16.mxu0 %v406
    %553 = vmatpush2.bf16.msra.mxu0 %v405
    %554 = vmatprep.subr.bf16.mxu0 %v402
    %555 = vmatpush2.bf16.msra.mxu0 %v401
    %556 = vmatprep.subr.bf16.mxu0 %v398
    %557 = vmatpush2.bf16.msra.mxu0 %v397
    %558 = vmatprep.subr.bf16.mxu0 %v394
    %559 = vmatpush2.bf16.msra.mxu0 %v393
    %560 = vmatprep.mubr.bf16.mxu0 %v80
    %561 = vmatmul.mubr.bf16.gmra.mxu0 %v79
    %v562 = vpop.f32.mrf.mxu0
    %v563 = vadd.f32 %v158, %v562
    %v564 = vpop.f32.mrf.mxu0
    %v565 = vadd.f32 %v162, %v564
    %v566 = vpop.f32.mrf.mxu0
    %v567 = vpop.f32.mrf.mxu0
    %568 = vdwg.mxu0
    %v569 = vmul.f32 %v522, 0.2
    %v570 = vmul.f32 %v524, 0.2
    %v571 = vmul.f32 %v563, 0.2
    %v572 = vmul.f32 %v565, 0.2
    %v573 = vmax.f32 %v522, %v569
    %v574 = vmax.f32 %v524, %v570
    %v575 = vmax.f32 %v563, %v571
    %v576 = vmax.f32 %v565, %v572
    %v577 = vpack.c.bf16 %v573, %v573
    %v578 = vpack.c.bf16 %v574, %v574
    %v579 = vpack.c.bf16 %v575, %v575
    %v580 = vpack.c.bf16 %v576, %v576
    %v581 = vld [vmem:[#allocation4] sm:$0xff]
    %v582 = vld [vmem:[#allocation4 + $0x8] sm:$0xff]
    %v583 = vld [vmem:[#allocation4 + $0x10] sm:$0xff]
    %v584 = vld [vmem:[#allocation4 + $0x18] sm:$0xff]
    %v585 = vld [vmem:[#allocation4 + $0x20] sm:$0xff]
    %v586 = vld [vmem:[#allocation4 + $0x28] sm:$0xff]
    %v587 = vld [vmem:[#allocation4 + $0x30] sm:$0xff]
    %v588 = vld [vmem:[#allocation4 + $0x38] sm:$0xff]
    %v589 = vld [vmem:[#allocation4 + $0x40] sm:$0xff]
    %v590 = vld [vmem:[#allocation4 + $0x48] sm:$0xff]
    %v591 = vld [vmem:[#allocation4 + $0x50] sm:$0xff]
    %v592 = vld [vmem:[#allocation4 + $0x58] sm:$0xff]
    %v593 = vld [vmem:[#allocation4 + $0x60] sm:$0xff]
    %v594 = vld [vmem:[#allocation4 + $0x68] sm:$0xff]
    %v595 = vld [vmem:[#allocation4 + $0x70] sm:$0xff]
    %v596 = vld [vmem:[#allocation4 + $0x78] sm:$0xff]
    %v597 = vld [vmem:[#allocation4 + $0x80] sm:$0xff]
    %v598 = vld [vmem:[#allocation4 + $0x88] sm:$0xff]
    %v599 = vld [vmem:[#allocation4 + $0x90] sm:$0xff]
    %v600 = vld [vmem:[#allocation4 + $0x98] sm:$0xff]
    %v601 = vld [vmem:[#allocation4 + $0xa0] sm:$0xff]
    %v602 = vld [vmem:[#allocation4 + $0xa8] sm:$0xff]
    %v603 = vld [vmem:[#allocation4 + $0xb0] sm:$0xff]
    %v604 = vld [vmem:[#allocation4 + $0xb8] sm:$0xff]
    %v605 = vld [vmem:[#allocation4 + $0xc0] sm:$0xff]
    %v606 = vld [vmem:[#allocation4 + $0xc8] sm:$0xff]
    %v607 = vld [vmem:[#allocation4 + $0xd0] sm:$0xff]
    %v608 = vld [vmem:[#allocation4 + $0xd8] sm:$0xff]
    %v609 = vld [vmem:[#allocation4 + $0xe0] sm:$0xff]
    %v610 = vld [vmem:[#allocation4 + $0xe8] sm:$0xff]
    %v611 = vld [vmem:[#allocation4 + $0xf0] sm:$0xff]
    %v612 = vld [vmem:[#allocation4 + $0xf8] sm:$0xff]
    %v613 = vld [vmem:[#allocation4 + $0x100] sm:$0xff]
    %v614 = vld [vmem:[#allocation4 + $0x108] sm:$0xff]
    %v615 = vld [vmem:[#allocation4 + $0x110] sm:$0xff]
    %v616 = vld [vmem:[#allocation4 + $0x118] sm:$0xff]
    %v617 = vld [vmem:[#allocation4 + $0x120] sm:$0xff]
    %v618 = vld [vmem:[#allocation4 + $0x128] sm:$0xff]
    %v619 = vld [vmem:[#allocation4 + $0x130] sm:$0xff]
    %v620 = vld [vmem:[#allocation4 + $0x138] sm:$0xff]
    %v621 = vld [vmem:[#allocation4 + $0x140] sm:$0xff]
    %v622 = vld [vmem:[#allocation4 + $0x148] sm:$0xff]
    %v623 = vld [vmem:[#allocation4 + $0x150] sm:$0xff]
    %v624 = vld [vmem:[#allocation4 + $0x158] sm:$0xff]
    %v625 = vld [vmem:[#allocation4 + $0x160] sm:$0xff]
    %v626 = vld [vmem:[#allocation4 + $0x168] sm:$0xff]
    %v627 = vld [vmem:[#allocation4 + $0x170] sm:$0xff]
    %v628 = vld [vmem:[#allocation4 + $0x178] sm:$0xff]
    %v629 = vld [vmem:[#allocation4 + $0x180] sm:$0xff]
    %v630 = vld [vmem:[#allocation4 + $0x188] sm:$0xff]
    %v631 = vld [vmem:[#allocation4 + $0x190] sm:$0xff]
    %v632 = vld [vmem:[#allocation4 + $0x198] sm:$0xff]
    %v633 = vld [vmem:[#allocation4 + $0x1a0] sm:$0xff]
    %v634 = vld [vmem:[#allocation4 + $0x1a8] sm:$0xff]
    %v635 = vld [vmem:[#allocation4 + $0x1b0] sm:$0xff]
    %v636 = vld [vmem:[#allocation4 + $0x1b8] sm:$0xff]
    %v637 = vld [vmem:[#allocation4 + $0x1c0] sm:$0xff]
    %v638 = vld [vmem:[#allocation4 + $0x1c8] sm:$0xff]
    %v639 = vld [vmem:[#allocation4 + $0x1d0] sm:$0xff]
    %v640 = vld [vmem:[#allocation4 + $0x1d8] sm:$0xff]
    %v641 = vld [vmem:[#allocation4 + $0x1e0] sm:$0xff]
    %v642 = vld [vmem:[#allocation4 + $0x1e8] sm:$0xff]
    %v643 = vld [vmem:[#allocation4 + $0x1f0] sm:$0xff]
    %v644 = vld [vmem:[#allocation4 + $0x1f8] sm:$0xff]
    %v645 = vld [vmem:[%s4] sm:$0x3]
    %v647 = vlaneseq
    %v648 = vshrl.u32 %v647, 7
    %v649 = vsub.s32 0, %v648
    %v650 = vrot.slane %v645, %v649
    %v651 = vlaneseq
    %v652 = vshrl.u32 %v651, 7
    %v653 = vsub.s32 1, %v652
    %v654 = vrot.slane %v645, %v653
    %v721 = vunpack.c.l.b16 %v581
    %v722 = vunpack.c.h.b16 %v581
    %v723 = vunpack.c.l.b16 %v582
    %v724 = vunpack.c.h.b16 %v582
    %v725 = vunpack.c.l.b16 %v583
    %v726 = vunpack.c.h.b16 %v583
    %v727 = vunpack.c.l.b16 %v584
    %v728 = vunpack.c.h.b16 %v584
    %v729 = vunpack.c.l.b16 %v585
    %v730 = vunpack.c.h.b16 %v585
    %v731 = vunpack.c.l.b16 %v586
    %v732 = vunpack.c.h.b16 %v586
    %v733 = vunpack.c.l.b16 %v587
    %v734 = vunpack.c.h.b16 %v587
    %v735 = vunpack.c.l.b16 %v588
    %v736 = vunpack.c.h.b16 %v588
    %v737 = vunpack.c.l.b16 %v589
    %v738 = vunpack.c.h.b16 %v589
    %v739 = vunpack.c.l.b16 %v590
    %v740 = vunpack.c.h.b16 %v590
    %v741 = vunpack.c.l.b16 %v591
    %v742 = vunpack.c.h.b16 %v591
    %v743 = vunpack.c.l.b16 %v592
    %v744 = vunpack.c.h.b16 %v592
    %v745 = vunpack.c.l.b16 %v593
    %v746 = vunpack.c.h.b16 %v593
    %v747 = vunpack.c.l.b16 %v594
    %v748 = vunpack.c.h.b16 %v594
    %v749 = vunpack.c.l.b16 %v595
    %v750 = vunpack.c.h.b16 %v595
    %v751 = vunpack.c.l.b16 %v596
    %v752 = vunpack.c.h.b16 %v596
    %v753 = vunpack.c.l.b16 %v597
    %v754 = vunpack.c.h.b16 %v597
    %v755 = vunpack.c.l.b16 %v598
    %v756 = vunpack.c.h.b16 %v598
    %v757 = vunpack.c.l.b16 %v599
    %v758 = vunpack.c.h.b16 %v599
    %v759 = vunpack.c.l.b16 %v600
    %v760 = vunpack.c.h.b16 %v600
    %v761 = vunpack.c.l.b16 %v601
    %v762 = vunpack.c.h.b16 %v601
    %v763 = vunpack.c.l.b16 %v602
    %v764 = vunpack.c.h.b16 %v602
    %v765 = vunpack.c.l.b16 %v603
    %v766 = vunpack.c.h.b16 %v603
    %v767 = vunpack.c.l.b16 %v604
    %v768 = vunpack.c.h.b16 %v604
    %v769 = vunpack.c.l.b16 %v605
    %v770 = vunpack.c.h.b16 %v605
    %v771 = vunpack.c.l.b16 %v606
    %v772 = vunpack.c.h.b16 %v606
    %v773 = vunpack.c.l.b16 %v607
    %v774 = vunpack.c.h.b16 %v607
    %v775 = vunpack.c.l.b16 %v608
    %v776 = vunpack.c.h.b16 %v608
    %v777 = vunpack.c.l.b16 %v609
    %v778 = vunpack.c.h.b16 %v609
    %v779 = vunpack.c.l.b16 %v610
    %v780 = vunpack.c.h.b16 %v610
    %v781 = vunpack.c.l.b16 %v611
    %v782 = vunpack.c.h.b16 %v611
    %v783 = vunpack.c.l.b16 %v612
    %v784 = vunpack.c.h.b16 %v612
    %v785 = vunpack.c.l.b16 %v613
    %v786 = vunpack.c.h.b16 %v613
    %v787 = vunpack.c.l.b16 %v614
    %v788 = vunpack.c.h.b16 %v614
    %v789 = vunpack.c.l.b16 %v615
    %v790 = vunpack.c.h.b16 %v615
    %v791 = vunpack.c.l.b16 %v616
    %v792 = vunpack.c.h.b16 %v616
    %v793 = vunpack.c.l.b16 %v617
    %v794 = vunpack.c.h.b16 %v617
    %v795 = vunpack.c.l.b16 %v618
    %v796 = vunpack.c.h.b16 %v618
    %v797 = vunpack.c.l.b16 %v619
    %v798 = vunpack.c.h.b16 %v619
    %v799 = vunpack.c.l.b16 %v620
    %v800 = vunpack.c.h.b16 %v620
    %v801 = vunpack.c.l.b16 %v621
    %v802 = vunpack.c.h.b16 %v621
    %v803 = vunpack.c.l.b16 %v622
    %v804 = vunpack.c.h.b16 %v622
    %v805 = vunpack.c.l.b16 %v623
    %v806 = vunpack.c.h.b16 %v623
    %v807 = vunpack.c.l.b16 %v624
    %v808 = vunpack.c.h.b16 %v624
    %v809 = vunpack.c.l.b16 %v625
    %v810 = vunpack.c.h.b16 %v625
    %v811 = vunpack.c.l.b16 %v626
    %v812 = vunpack.c.h.b16 %v626
    %v813 = vunpack.c.l.b16 %v627
    %v814 = vunpack.c.h.b16 %v627
    %v815 = vunpack.c.l.b16 %v628
    %v816 = vunpack.c.h.b16 %v628
    %v817 = vunpack.c.l.b16 %v629
    %v818 = vunpack.c.h.b16 %v629
    %v819 = vunpack.c.l.b16 %v630
    %v820 = vunpack.c.h.b16 %v630
    %v821 = vunpack.c.l.b16 %v631
    %v822 = vunpack.c.h.b16 %v631
    %v823 = vunpack.c.l.b16 %v632
    %v824 = vunpack.c.h.b16 %v632
    %v825 = vunpack.c.l.b16 %v633
    %v826 = vunpack.c.h.b16 %v633
    %v827 = vunpack.c.l.b16 %v634
    %v828 = vunpack.c.h.b16 %v634
    %v829 = vunpack.c.l.b16 %v635
    %v830 = vunpack.c.h.b16 %v635
    %v831 = vunpack.c.l.b16 %v636
    %v832 = vunpack.c.h.b16 %v636
    %v833 = vunpack.c.l.b16 %v637
    %v834 = vunpack.c.h.b16 %v637
    %v835 = vunpack.c.l.b16 %v638
    %v836 = vunpack.c.h.b16 %v638
    %v837 = vunpack.c.l.b16 %v639
    %v838 = vunpack.c.h.b16 %v639
    %v839 = vunpack.c.l.b16 %v640
    %v840 = vunpack.c.h.b16 %v640
    %v841 = vunpack.c.l.b16 %v641
    %v842 = vunpack.c.h.b16 %v641
    %v843 = vunpack.c.l.b16 %v642
    %v844 = vunpack.c.h.b16 %v642
    %v845 = vunpack.c.l.b16 %v643
    %v846 = vunpack.c.h.b16 %v643
    %v847 = vunpack.c.l.b16 %v644
    %v848 = vunpack.c.h.b16 %v644
    %v849 = vpack.c.b16 %v723, %v721
    %v850 = vpack.c.b16 %v724, %v722
    %v851 = vpack.c.b16 %v727, %v725
    %v852 = vpack.c.b16 %v728, %v726
    %v853 = vpack.c.b16 %v731, %v729
    %v854 = vpack.c.b16 %v732, %v730
    %v855 = vpack.c.b16 %v735, %v733
    %v856 = vpack.c.b16 %v736, %v734
    %v857 = vpack.c.b16 %v739, %v737
    %v858 = vpack.c.b16 %v740, %v738
    %v859 = vpack.c.b16 %v743, %v741
    %v860 = vpack.c.b16 %v744, %v742
    %v861 = vpack.c.b16 %v747, %v745
    %v862 = vpack.c.b16 %v748, %v746
    %v863 = vpack.c.b16 %v751, %v749
    %v864 = vpack.c.b16 %v752, %v750
    %v865 = vpack.c.b16 %v755, %v753
    %v866 = vpack.c.b16 %v756, %v754
    %v867 = vpack.c.b16 %v759, %v757
    %v868 = vpack.c.b16 %v760, %v758
    %v869 = vpack.c.b16 %v763, %v761
    %v870 = vpack.c.b16 %v764, %v762
    %v871 = vpack.c.b16 %v767, %v765
    %v872 = vpack.c.b16 %v768, %v766
    %v873 = vpack.c.b16 %v771, %v769
    %v874 = vpack.c.b16 %v772, %v770
    %v875 = vpack.c.b16 %v775, %v773
    %v876 = vpack.c.b16 %v776, %v774
    %v877 = vpack.c.b16 %v779, %v777
    %v878 = vpack.c.b16 %v780, %v778
    %v879 = vpack.c.b16 %v783, %v781
    %v880 = vpack.c.b16 %v784, %v782
    %v881 = vpack.c.b16 %v787, %v785
    %v882 = vpack.c.b16 %v788, %v786
    %v883 = vpack.c.b16 %v791, %v789
    %v884 = vpack.c.b16 %v792, %v790
    %v885 = vpack.c.b16 %v795, %v793
    %v886 = vpack.c.b16 %v796, %v794
    %v887 = vpack.c.b16 %v799, %v797
    %v888 = vpack.c.b16 %v800, %v798
    %v889 = vpack.c.b16 %v803, %v801
    %v890 = vpack.c.b16 %v804, %v802
    %v891 = vpack.c.b16 %v807, %v805
    %v892 = vpack.c.b16 %v808, %v806
    %v893 = vpack.c.b16 %v811, %v809
    %v894 = vpack.c.b16 %v812, %v810
    %v895 = vpack.c.b16 %v815, %v813
    %v896 = vpack.c.b16 %v816, %v814
    %v897 = vpack.c.b16 %v819, %v817
    %v898 = vpack.c.b16 %v820, %v818
    %v899 = vpack.c.b16 %v823, %v821
    %v900 = vpack.c.b16 %v824, %v822
    %v901 = vpack.c.b16 %v827, %v825
    %v902 = vpack.c.b16 %v828, %v826
    %v903 = vpack.c.b16 %v831, %v829
    %v904 = vpack.c.b16 %v832, %v830
    %v905 = vpack.c.b16 %v835, %v833
    %v906 = vpack.c.b16 %v836, %v834
    %v907 = vpack.c.b16 %v839, %v837
    %v908 = vpack.c.b16 %v840, %v838
    %v909 = vpack.c.b16 %v843, %v841
    %v910 = vpack.c.b16 %v844, %v842
    %v911 = vpack.c.b16 %v847, %v845
    %v912 = vpack.c.b16 %v848, %v846
    %977 = vmatprep.subr.bf16.mxu0 %v864
    %978 = vmatpush1.bf16.msra.mxu0 %v863
    %979 = vmatprep.subr.bf16.mxu0 %v862
    %980 = vmatpush1.bf16.msra.mxu0 %v861
    %981 = vmatprep.subr.bf16.mxu0 %v860
    %982 = vmatpush1.bf16.msra.mxu0 %v859
    %983 = vmatprep.subr.bf16.mxu0 %v858
    %984 = vmatpush1.bf16.msra.mxu0 %v857
    %985 = vmatprep.subr.bf16.mxu0 %v856
    %986 = vmatpush1.bf16.msra.mxu0 %v855
    %987 = vmatprep.subr.bf16.mxu0 %v854
    %988 = vmatpush1.bf16.msra.mxu0 %v853
    %989 = vmatprep.subr.bf16.mxu0 %v852
    %990 = vmatpush1.bf16.msra.mxu0 %v851
    %991 = vmatprep.subr.bf16.mxu0 %v850
    %992 = vmatpush1.bf16.msra.mxu0 %v849
    %993 = vmatprep.subr.bf16.mxu0 %v880
    %994 = vmatpush2.bf16.msra.mxu0 %v879
    %995 = vmatprep.subr.bf16.mxu0 %v878
    %996 = vmatpush2.bf16.msra.mxu0 %v877
    %997 = vmatprep.subr.bf16.mxu0 %v876
    %998 = vmatpush2.bf16.msra.mxu0 %v875
    %999 = vmatprep.subr.bf16.mxu0 %v874
    %1000 = vmatpush2.bf16.msra.mxu0 %v873
    %1001 = vmatprep.subr.bf16.mxu0 %v872
    %1002 = vmatpush2.bf16.msra.mxu0 %v871
    %1003 = vmatprep.subr.bf16.mxu0 %v870
    %1004 = vmatpush2.bf16.msra.mxu0 %v869
    %1005 = vmatprep.subr.bf16.mxu0 %v868
    %1006 = vmatpush2.bf16.msra.mxu0 %v867
    %1007 = vmatprep.subr.bf16.mxu0 %v866
    %1008 = vmatpush2.bf16.msra.mxu0 %v865
    %1009 = vmatprep.mubr.bf16.mxu0 %v578
    %1010 = vmatmul.mubr.bf16.gmra.mxu0 %v577
    %v1011 = vpop.f32.mrf.mxu0
    %v1012 = vadd.f32 %v650, %v1011
    %v1013 = vpop.f32.mrf.mxu0
    %v1014 = vadd.f32 %v654, %v1013
    %v1015 = vpop.f32.mrf.mxu0
    %v1016 = vpop.f32.mrf.mxu0
    %1017 = vdwg.mxu0
    %1018 = vmatprep.subr.bf16.mxu0 %v896
    %1019 = vmatpush1.bf16.msra.mxu0 %v895
    %1020 = vmatprep.subr.bf16.mxu0 %v894
    %1021 = vmatpush1.bf16.msra.mxu0 %v893
    %1022 = vmatprep.subr.bf16.mxu0 %v892
    %1023 = vmatpush1.bf16.msra.mxu0 %v891
    %1024 = vmatprep.subr.bf16.mxu0 %v890
    %1025 = vmatpush1.bf16.msra.mxu0 %v889
    %1026 = vmatprep.subr.bf16.mxu0 %v888
    %1027 = vmatpush1.bf16.msra.mxu0 %v887
    %1028 = vmatprep.subr.bf16.mxu0 %v886
    %1029 = vmatpush1.bf16.msra.mxu0 %v885
    %1030 = vmatprep.subr.bf16.mxu0 %v884
    %1031 = vmatpush1.bf16.msra.mxu0 %v883
    %1032 = vmatprep.subr.bf16.mxu0 %v882
    %1033 = vmatpush1.bf16.msra.mxu0 %v881
    %1034 = vmatprep.subr.bf16.mxu0 %v912
    %1035 = vmatpush2.bf16.msra.mxu0 %v911
    %1036 = vmatprep.subr.bf16.mxu0 %v910
    %1037 = vmatpush2.bf16.msra.mxu0 %v909
    %1038 = vmatprep.subr.bf16.mxu0 %v908
    %1039 = vmatpush2.bf16.msra.mxu0 %v907
    %1040 = vmatprep.subr.bf16.mxu0 %v906
    %1041 = vmatpush2.bf16.msra.mxu0 %v905
    %1042 = vmatprep.subr.bf16.mxu0 %v904
    %1043 = vmatpush2.bf16.msra.mxu0 %v903
    %1044 = vmatprep.subr.bf16.mxu0 %v902
    %1045 = vmatpush2.bf16.msra.mxu0 %v901
    %1046 = vmatprep.subr.bf16.mxu0 %v900
    %1047 = vmatpush2.bf16.msra.mxu0 %v899
    %1048 = vmatprep.subr.bf16.mxu0 %v898
    %1049 = vmatpush2.bf16.msra.mxu0 %v897
    %1050 = vmatprep.mubr.bf16.mxu0 %v580
    %1051 = vmatmul.mubr.bf16.gmra.mxu0 %v579
    %v1052 = vpop.f32.mrf.mxu0
    %v1053 = vadd.f32 %v1012, %v1052
    %v1054 = vpop.f32.mrf.mxu0
    %v1055 = vadd.f32 %v1014, %v1054
    %v1056 = vpop.f32.mrf.mxu0
    %v1057 = vpop.f32.mrf.mxu0
    %1058 = vdwg.mxu0
    %v1059 = vmul.f32 %v1053, 0.2
    %v1060 = vmul.f32 %v1055, 0.2
    %v1061 = vmax.f32 %v1053, %v1059
    %v1062 = vmax.f32 %v1055, %v1060
    %v1063 = vld [vmem:[#allocation6] sm:$0xff]
    %v1064 = vld [vmem:[#allocation6 + $0x8] sm:$0xff]
    %v1065 = vld [vmem:[#allocation6 + $0x10] sm:$0xff]
    %v1066 = vld [vmem:[#allocation6 + $0x18] sm:$0xff]
    %v1067 = vld [vmem:[#allocation6 + $0x20] sm:$0xff]
    %v1068 = vld [vmem:[#allocation6 + $0x28] sm:$0xff]
    %v1069 = vld [vmem:[#allocation6 + $0x30] sm:$0xff]
    %v1070 = vld [vmem:[#allocation6 + $0x38] sm:$0xff]
    %v1071 = vld [vmem:[#allocation6 + $0x40] sm:$0xff]
    %v1072 = vld [vmem:[#allocation6 + $0x48] sm:$0xff]
    %v1073 = vld [vmem:[#allocation6 + $0x50] sm:$0xff]
    %v1074 = vld [vmem:[#allocation6 + $0x58] sm:$0xff]
    %v1075 = vld [vmem:[#allocation6 + $0x60] sm:$0xff]
    %v1076 = vld [vmem:[#allocation6 + $0x68] sm:$0xff]
    %v1077 = vld [vmem:[#allocation6 + $0x70] sm:$0xff]
    %v1078 = vld [vmem:[#allocation6 + $0x78] sm:$0xff]
    %v1079 = vld [vmem:[#allocation6 + $0x80] sm:$0xff]
    %v1080 = vld [vmem:[#allocation6 + $0x88] sm:$0xff]
    %v1081 = vld [vmem:[#allocation6 + $0x90] sm:$0xff]
    %v1082 = vld [vmem:[#allocation6 + $0x98] sm:$0xff]
    %v1083 = vld [vmem:[#allocation6 + $0xa0] sm:$0xff]
    %v1084 = vld [vmem:[#allocation6 + $0xa8] sm:$0xff]
    %v1085 = vld [vmem:[#allocation6 + $0xb0] sm:$0xff]
    %v1086 = vld [vmem:[#allocation6 + $0xb8] sm:$0xff]
    %v1087 = vld [vmem:[#allocation6 + $0xc0] sm:$0xff]
    %v1088 = vld [vmem:[#allocation6 + $0xc8] sm:$0xff]
    %v1089 = vld [vmem:[#allocation6 + $0xd0] sm:$0xff]
    %v1090 = vld [vmem:[#allocation6 + $0xd8] sm:$0xff]
    %v1091 = vld [vmem:[#allocation6 + $0xe0] sm:$0xff]
    %v1092 = vld [vmem:[#allocation6 + $0xe8] sm:$0xff]
    %v1093 = vld [vmem:[#allocation6 + $0xf0] sm:$0xff]
    %v1094 = vld [vmem:[#allocation6 + $0xf8] sm:$0xff]
    %v1095 = vld [vmem:[%s6] sm:$0x1]
    %v1097 = vlaneseq
    %v1098 = vshrl.u32 %v1097, 7
    %v1099 = vsub.s32 0, %v1098
    %v1100 = vrot.slane %v1095, %v1099
    %1102 = vmatprep.subr.mxu0 0.0
    %1103 = vmatpush1.msra.mxu0 %v1078
    %1104 = vmatprep.subr.mxu0 0.0
    %1105 = vmatpush1.msra.mxu0 %v1077
    %1106 = vmatprep.subr.mxu0 0.0
    %1107 = vmatpush1.msra.mxu0 %v1076
    %1108 = vmatprep.subr.mxu0 0.0
    %1109 = vmatpush1.msra.mxu0 %v1075
    %1110 = vmatprep.subr.mxu0 0.0
    %1111 = vmatpush1.msra.mxu0 %v1074
    %1112 = vmatprep.subr.mxu0 0.0
    %1113 = vmatpush1.msra.mxu0 %v1073
    %1114 = vmatprep.subr.mxu0 0.0
    %1115 = vmatpush1.msra.mxu0 %v1072
    %1116 = vmatprep.subr.mxu0 0.0
    %1117 = vmatpush1.msra.mxu0 %v1071
    %1118 = vmatprep.subr.mxu0 0.0
    %1119 = vmatpush1.msra.mxu0 %v1070
    %1120 = vmatprep.subr.mxu0 0.0
    %1121 = vmatpush1.msra.mxu0 %v1069
    %1122 = vmatprep.subr.mxu0 0.0
    %1123 = vmatpush1.msra.mxu0 %v1068
    %1124 = vmatprep.subr.mxu0 0.0
    %1125 = vmatpush1.msra.mxu0 %v1067
    %1126 = vmatprep.subr.mxu0 0.0
    %1127 = vmatpush1.msra.mxu0 %v1066
    %1128 = vmatprep.subr.mxu0 0.0
    %1129 = vmatpush1.msra.mxu0 %v1065
    %1130 = vmatprep.subr.mxu0 0.0
    %1131 = vmatpush1.msra.mxu0 %v1064
    %1132 = vmatprep.subr.mxu0 0.0
    %1133 = vmatpush1.msra.mxu0 %v1063
    %1134 = vmatprep.subr.mxu0 0.0
    %1135 = vmatpush2.msra.mxu0 %v1094
    %1136 = vmatprep.subr.mxu0 0.0
    %1137 = vmatpush2.msra.mxu0 %v1093
    %1138 = vmatprep.subr.mxu0 0.0
    %1139 = vmatpush2.msra.mxu0 %v1092
    %1140 = vmatprep.subr.mxu0 0.0
    %1141 = vmatpush2.msra.mxu0 %v1091
    %1142 = vmatprep.subr.mxu0 0.0
    %1143 = vmatpush2.msra.mxu0 %v1090
    %1144 = vmatprep.subr.mxu0 0.0
    %1145 = vmatpush2.msra.mxu0 %v1089
    %1146 = vmatprep.subr.mxu0 0.0
    %1147 = vmatpush2.msra.mxu0 %v1088
    %1148 = vmatprep.subr.mxu0 0.0
    %1149 = vmatpush2.msra.mxu0 %v1087
    %1150 = vmatprep.subr.mxu0 0.0
    %1151 = vmatpush2.msra.mxu0 %v1086
    %1152 = vmatprep.subr.mxu0 0.0
    %1153 = vmatpush2.msra.mxu0 %v1085
    %1154 = vmatprep.subr.mxu0 0.0
    %1155 = vmatpush2.msra.mxu0 %v1084
    %1156 = vmatprep.subr.mxu0 0.0
    %1157 = vmatpush2.msra.mxu0 %v1083
    %1158 = vmatprep.subr.mxu0 0.0
    %1159 = vmatpush2.msra.mxu0 %v1082
    %1160 = vmatprep.subr.mxu0 0.0
    %1161 = vmatpush2.msra.mxu0 %v1081
    %1162 = vmatprep.subr.mxu0 0.0
    %1163 = vmatpush2.msra.mxu0 %v1080
    %1164 = vmatprep.subr.mxu0 0.0
    %1165 = vmatpush2.msra.mxu0 %v1079
    %1166 = vmatprep.mubr.f32.mxu0 %v1062
    %1167 = vmatmul.mubr.f32.gmra.mxu0 %v1061
    %v1168 = vpop.f32.mrf.mxu0
    %v1169 = vadd.f32 %v1100, %v1168
    %v1170 = vpop.f32.mrf.mxu0
    %1171 = vdwg.mxu0
    %1172 = vst [vmem:[%s7] sm:$0x3] %v1169
    // Predicated region
    $region42: #{gan_discriminator_forward.1} parent=1 // pred_check
      _
    $region43: #{gan_discriminator_forward.1} parent=1 // pred_check_branch
      %1174 = sbr.rel (0) target = $region45
    $region44: #{gan_discriminator_forward.1} parent=1 // pred_region
      _
    $region45: #{gan_discriminator_forward.1} parent=1 // pred_fallthru
      _
    // Predicated region
    $region46: #{gan_discriminator_forward.1} parent=1 // pred_check
      _
    $region47: #{gan_discriminator_forward.1} parent=1 // pred_check_branch
      %1176 = sbr.rel (0) target = $region49
    $region48: #{gan_discriminator_forward.1} parent=1 // pred_region
      _
    $region49: #{gan_discriminator_forward.1} parent=1 // pred_fallthru
      _
    %1177 = vsyncpa [#allocation3], 1
    %1178 = vsyncpa [#allocation5], 1

</llo_original>
